<compile_context>
chip_gen: v5e
topology: v5e:2x2
jax: 0.10.0
libtpu: 0.0.40
codegen_flags: <defaults>
</compile_context>

<pallas_src>
import jax
import jax.numpy as jnp
from jax.experimental import pallas as pl
from jax.experimental.pallas import tpu as pltpu

_LANE = 128
_EPS = 1e-07

# Up to 4096 sublanes per block -> 2 MiB per f32 operand block.
_MAX_TILE_ROWS = 4096
_VMEM_LIMIT_BYTES = 32 * 1024 * 1024


def _wbce_kernel(pos_weight_ref, target_ref, output_ref, loss_ref):
    """Elementwise weighted BCE on one (tile_rows, 128) block."""
    pw = pos_weight_ref[0]                       # runtime scalar from SMEM
    t = target_ref[...].astype(jnp.float32)
    p = output_ref[...].astype(jnp.float32)

    # PyTorch: p = clamp(output, eps, 1-eps); logits = log(p/(1-p));
    #          loss = weighted_cross_entropy_with_logits(logits, target)
    # which reduces exactly (for p in (0,1)) to:
    #          loss = -(pos_weight * t * log(p) + (1 - t) * log(1 - p))
    p = jnp.clip(p, _EPS, 1.0 - _EPS)
    loss = -(pw * t * jnp.log(p) + (1.0 - t) * jnp.log1p(-p))

    loss_ref[...] = loss.astype(loss_ref.dtype)


def _sublane_multiple(*dtypes):
    """Native sublane packing multiple: 8 for 32-bit, 16 for 16-bit, 32 for 8-bit."""
    min_bytes = min(jnp.dtype(d).itemsize for d in dtypes)
    return 8 * max(1, 4 // max(1, min_bytes))


def weighted_binary_cross_entropy(target, output, pos_weight, *,
                                  max_tile_rows=_MAX_TILE_ROWS):
    """Pallas implementation of WeightedBinaryCrossEntropy.forward(target, output).

    target, output: same shape (e.g. NCHW).  target may be any dtype that casts
    to f32 (f32 / bf16 / int8 / bool mask).  Returns the componentwise loss with
    the same shape and dtype as `output`.  pos_weight may be a Python number or
    a (traced) JAX scalar.
    """
    assert target.shape == output.shape
    orig_shape = output.shape
    out_dtype = output.dtype

    n = output.size
    t_flat = target.reshape(-1)
    o_flat = output.reshape(-1)

    # Rare fallback: element count not a multiple of 128 lanes.
    # (target=0, output=0.5 padding -> finite garbage losses, sliced off below.)
    pad = (-n) % _LANE
    if pad:
        t_flat = jnp.concatenate([t_flat, jnp.zeros((pad,), t_flat.dtype)])
        o_flat = jnp.concatenate([o_flat, jnp.full((pad,), 0.5, o_flat.dtype)])

    rows = (n + pad) // _LANE
    t2 = t_flat.reshape(rows, _LANE)
    o2 = o_flat.reshape(rows, _LANE)

    # Large tiles; shrink for small inputs.  If the tile does not cover the
    # whole slab, its sublane count must be a multiple of the dtype-native
    # packing; ragged last block handled by pl.cdiv + boundary masking.
    tile_rows = min(max_tile_rows, rows)
    if tile_rows != rows:
        sub = _sublane_multiple(target.dtype, output.dtype, out_dtype)
        tile_rows = max(sub, (tile_rows // sub) * sub)

    grid = (pl.cdiv(rows, tile_rows),)

    # Runtime pos_weight -> SMEM via scalar prefetch.
    pos_weight_arr = jnp.asarray(pos_weight, jnp.float32).reshape((1,))

    t_bytes = jnp.dtype(target.dtype).itemsize
    o_bytes = jnp.dtype(output.dtype).itemsize
    out_bytes = jnp.dtype(out_dtype).itemsize
    cost = pl.CostEstimate(
        flops=10 * n,
        transcendentals=2 * n,
        bytes_accessed=n * (t_bytes + o_bytes + out_bytes),
    )

    loss2 = pl.pallas_call(
        _wbce_kernel,
        out_shape=jax.ShapeDtypeStruct((rows, _LANE), out_dtype),
        grid_spec=pltpu.PrefetchScalarGridSpec(
            num_scalar_prefetch=1,
            grid=grid,
            in_specs=[
                pl.BlockSpec((tile_rows, _LANE), lambda i, pw: (i, 0)),
                pl.BlockSpec((tile_rows, _LANE), lambda i, pw: (i, 0)),
            ],
            out_specs=pl.BlockSpec((tile_rows, _LANE), lambda i, pw: (i, 0)),
        ),
        compiler_params=pltpu.CompilerParams(
            dimension_semantics=("parallel",),          # megacore sharding
            vmem_limit_bytes=_VMEM_LIMIT_BYTES,         # explicit budget
        ),
        cost_estimate=cost,
    )(pos_weight_arr, t2, o2)

    if pad:
        return loss2.reshape(-1)[:n].reshape(orig_shape)
    return loss2.reshape(orig_shape)


def _reference(target, output, pos_weight):
    """Pure-JAX reference mirroring the PyTorch code path exactly."""
    output = jnp.clip(output, _EPS, 1.0 - _EPS)
    logits = jnp.log(output / (1.0 - output))
    l = 1.0 + (pos_weight - 1.0) * target
    return (1.0 - target) * logits + l * (
        jnp.log(1.0 + jnp.exp(-jnp.abs(logits))) + jnp.maximum(-logits, 0.0)
    )


if __name__ == "__main__":
    key = jax.random.PRNGKey(0)
    k1, k2 = jax.random.split(key)

    B, C, H, W = 2, 4, 16, 16  # NCHW, same shape for target and output
    pos_weight = 2.0           # "parameter" from __init__

    # target: binary mask; output: probabilities in (0, 1)
    target = (jax.random.uniform(k1, (B, C, H, W)) > 0.5).astype(jnp.float32)
    output = jax.random.uniform(k2, (B, C, H, W), minval=0.01, maxval=0.99)

    ref = _reference(target, output, pos_weight)

    # Eager call with a Python-float pos_weight.
    loss = weighted_binary_cross_entropy(target, output, pos_weight)
    loss = jax.block_until_ready(loss)
    assert loss.shape == target.shape
    assert loss.dtype == output.dtype
    assert jnp.allclose(loss, ref, atol=1e-5, rtol=1e-5), "mismatch vs reference"

    # Jitted call with a traced pos_weight (previously unsupported).
    loss_jit = jax.jit(weighted_binary_cross_entropy)(
        target, output, jnp.float32(pos_weight))
    loss_jit = jax.block_until_ready(loss_jit)
    assert jnp.allclose(loss_jit, ref, atol=1e-5, rtol=1e-5), "jit mismatch"

    print("KERNEL_OK")
</pallas_src>

<mosaic_0001>
module attributes {stable_mosaic.version = 11 : i64} {
  func.func @_wbce_kernel(%arg0: i32, %arg1: memref<1xf32, #tpu.memory_space<smem>>, %arg2: memref<16x128xf32, #tpu.memory_space<vmem>>, %arg3: memref<16x128xf32, #tpu.memory_space<vmem>>, %arg4: memref<16x128xf32, #tpu.memory_space<vmem>>) attributes {dimension_semantics = [#tpu.dimension_semantics<parallel>], iteration_bounds = array<i64: 1>, scalar_prefetch = 1 : i64, scratch_operands = 0 : i64, tpu.core_type = #tpu.core_type<tc>, window_params = [{transform_indices = @transform_0, window_bounds = array<i64: 16, 128>}, {transform_indices = @transform_1, window_bounds = array<i64: 16, 128>}, {transform_indices = @transform_2, window_bounds = array<i64: 16, 128>}]} {
    %c0 = arith.constant 0 : index
    %0 = memref.load %arg1[%c0] : memref<1xf32, #tpu.memory_space<smem>>
    %c0_0 = arith.constant 0 : index
    %c0_1 = arith.constant 0 : index
    %1 = vector.load %arg2[%c0_0, %c0_1] : memref<16x128xf32, #tpu.memory_space<vmem>>, vector<16x128xf32>
    %c0_2 = arith.constant 0 : index
    %c0_3 = arith.constant 0 : index
    %2 = vector.load %arg3[%c0_2, %c0_3] : memref<16x128xf32, #tpu.memory_space<vmem>>, vector<16x128xf32>
    %cst = arith.constant 1.000000e-07 : f32
    %cst_4 = arith.constant 0.99999988 : f32
    %3 = vector.broadcast %cst : f32 to vector<16x128xf32>
    %4 = arith.maximumf %3, %2 : vector<16x128xf32>
    %5 = vector.broadcast %cst_4 : f32 to vector<16x128xf32>
    %6 = arith.minimumf %5, %4 : vector<16x128xf32>
    %7 = vector.broadcast %0 : f32 to vector<16x128xf32>
    %8 = arith.mulf %7, %1 : vector<16x128xf32>
    %9 = math.log %6 : vector<16x128xf32>
    %10 = arith.mulf %8, %9 : vector<16x128xf32>
    %cst_5 = arith.constant 1.000000e+00 : f32
    %11 = vector.broadcast %cst_5 : f32 to vector<16x128xf32>
    %12 = arith.subf %11, %1 : vector<16x128xf32>
    %cst_6 = arith.constant 0.000000e+00 : f32
    %13 = vector.broadcast %cst_6 : f32 to vector<16x128xf32>
    %14 = arith.subf %13, %6 : vector<16x128xf32>
    %15 = math.log1p %14 : vector<16x128xf32>
    %16 = arith.mulf %12, %15 : vector<16x128xf32>
    %17 = arith.addf %10, %16 : vector<16x128xf32>
    %cst_7 = arith.constant 0.000000e+00 : f32
    %18 = vector.broadcast %cst_7 : f32 to vector<16x128xf32>
    %19 = arith.subf %18, %17 : vector<16x128xf32>
    %c0_8 = arith.constant 0 : index
    %c0_9 = arith.constant 0 : index
    %20 = vector.load %arg4[%c0_8, %c0_9] : memref<16x128xf32, #tpu.memory_space<vmem>>, vector<16x128xf32>
    tpu.vector_store %arg4[%c0_8, %c0_9], %19 {strides = array<i32>} : memref<16x128xf32, #tpu.memory_space<vmem>>, vector<16x128xf32>,
    return
  }
  func.func @transform_0(%arg0: i32, %arg1: memref<1xf32, #tpu.memory_space<smem>>) -> (i32, i32) {
    %c0_i32 = arith.constant 0 : i32
    %c0_i32_0 = arith.constant 0 : i32
    return %arg0, %c0_i32 : i32, i32
  }
  func.func @transform_1(%arg0: i32, %arg1: memref<1xf32, #tpu.memory_space<smem>>) -> (i32, i32) {
    %c0_i32 = arith.constant 0 : i32
    %c0_i32_0 = arith.constant 0 : i32
    return %arg0, %c0_i32 : i32, i32
  }
  func.func @transform_2(%arg0: i32, %arg1: memref<1xf32, #tpu.memory_space<smem>>) -> (i32, i32) {
    %c0_i32 = arith.constant 0 : i32
    %c0_i32_0 = arith.constant 0 : i32
    return %arg0, %c0_i32 : i32, i32
  }
}

</mosaic_0001>

<llo_original>
// kernel: tpu_custom_call.1
$region0: #{tpu_custom_call.1}
  #allocation0 [shape = 'u32[]', space=smem, size = 0x4, offset = 0x4, fixed_abs, tag = 'smem constant byte address 0x4 - core index']
  #allocation1 [shape = 'u32[72,128]{1,0:T(1,128)}', space=vmem, size = 0x9000, scoped, tag = 'internal scratch']
  #allocation2 [shape = 's32[1]{0}', space=sflag, size = 0x4, scoped, tag = 'scoped memory for tpu_custom_call.1']
  #allocation3 [shape = 'f32[1]{0:T(128)S(6)}', space=smem, size = 0x200, scoped, tag = 'prefetched SMEM operand 0']
  %s0 = inlined_call_operand.<no memory space> [shape: f32[1], index: 0, kind: input, shape index: {}]
  %s1 = inlined_call_operand.hbm [shape: f32[16,128], index: 1, kind: input, shape index: {}]
  %s2 = inlined_call_operand.hbm [shape: f32[16,128], index: 2, kind: input, shape index: {}]
  %s3 = inlined_call_operand.hbm [shape: f32[16,128], index: 3, kind: output, shape index: {}]
  %s4 = sld [smem:[#allocation0]]
  $region26: #{tpu_custom_call.1} parent=0
    _
  %s6 = ssub.s32 1, %s4
  %s7 = scalar_select 0, %s6, %s4
  %8 = sst [smem:[#allocation3]] %s0
  $region1: #{tpu_custom_call.1} parent=0
    #allocation4 [shape = 'u8[8192]{0}', space=vmem, size = 0x2000, scoped, tag = 'input window, operand 1, single buffered']
    #allocation5 [shape = 's32[1]{0}', space=sflag, size = 0x4, scoped, tag = 'scoped memory for tpu_custom_call.1']
    #allocation6 [shape = 's32[1]{0}', space=sflag, size = 0x4, scoped, tag = 'scoped memory for tpu_custom_call.1']
    #allocation7 [shape = 'u8[8192]{0}', space=vmem, size = 0x2000, scoped, tag = 'input window, operand 2, single buffered']
    #allocation8 [shape = 's32[1]{0}', space=sflag, size = 0x4, scoped, tag = 'scoped memory for tpu_custom_call.1']
    #allocation9 [shape = 'u8[8192]{0}', space=vmem, size = 0x2000, scoped, tag = 'output window, operand 0, single buffered']
    %9 = vsyncpa [#allocation5], 0
    %10 = vsyncpa [#allocation8], 0
    %11 = vsyncpa [#allocation6], 0
    // Predicated region
    $region2: #{tpu_custom_call.1} parent=1 // pred_check
      _
    $region3: #{tpu_custom_call.1} parent=1 // pred_check_branch
      %13 = sbr.rel (0) target = $region5
    $region4: #{tpu_custom_call.1} parent=1 // pred_region
      %15 = vsyncadd [#allocation5], 0
      %s16 = sshll.u32 %s1, 4
      %s17 = int_to_ptr.hbm [resolvable:$true] %s16
      %s18 = sshll.u32 [#allocation4], 4
      %s19 = int_to_ptr.vmem [resolvable:$true] %s18
      %24 = dma.hbm_to_vmem [thread:$0]  %s17, 256, %s19, [#allocation5], 128, 128, 8
    $region5: #{tpu_custom_call.1} parent=1 // pred_fallthru
      _
    // Predicated region
    $region6: #{tpu_custom_call.1} parent=1 // pred_check
      _
    $region7: #{tpu_custom_call.1} parent=1 // pred_check_branch
      %26 = sbr.rel (0) target = $region9
    $region8: #{tpu_custom_call.1} parent=1 // pred_region
      %28 = vsyncadd [#allocation8], 0
      %s29 = sshll.u32 %s2, 4
      %s30 = int_to_ptr.hbm [resolvable:$true] %s29
      %s31 = sshll.u32 [#allocation7], 4
      %s32 = int_to_ptr.vmem [resolvable:$true] %s31
      %37 = dma.hbm_to_vmem [thread:$0]  %s30, 256, %s32, [#allocation8], 128, 128, 8
    $region9: #{tpu_custom_call.1} parent=1 // pred_fallthru
      _
    // Predicated region
    $region10: #{tpu_custom_call.1} parent=1 // pred_check
      _
    $region11: #{tpu_custom_call.1} parent=1 // pred_check_branch
      %39 = sbr.rel (0) target = $region13
    $region12: #{tpu_custom_call.1} parent=1 // pred_region
      %41 = dma.done [#allocation5], 256
    $region13: #{tpu_custom_call.1} parent=1 // pred_fallthru
      _
    // Predicated region
    $region14: #{tpu_custom_call.1} parent=1 // pred_check
      _
    $region15: #{tpu_custom_call.1} parent=1 // pred_check_branch
      %43 = sbr.rel (0) target = $region17
    $region16: #{tpu_custom_call.1} parent=1 // pred_region
      %45 = dma.done [#allocation8], 256
    $region17: #{tpu_custom_call.1} parent=1 // pred_fallthru
      _
    %s46 = sld [smem:[#allocation3]]
    %v47 = vld [vmem:[#allocation4] sm:$0xff]
    %v48 = vld [vmem:[#allocation4 + $0x8] sm:$0xff]
    %v49 = vld [vmem:[#allocation7] sm:$0xff]
    %v50 = vld [vmem:[#allocation7 + $0x8] sm:$0xff]
    %v51 = vmax.f32 %v49, 1e-07
    %v52 = vmax.f32 %v50, 1e-07
    %v53 = vmin.f32 %v51, 0.9999999
    %v54 = vmin.f32 %v52, 0.9999999
    %v55 = vstv %s46
    %v56 = vmul.f32 %v55, %v47
    %v57 = vmul.f32 %v55, %v48
    %v58 = vlog2.pop %v53
    %v59 = vmul.f32 %v58, 0.6931472
    %v60 = vlog2.pop %v54
    %v61 = vmul.f32 %v60, 0.6931472
    %v62 = vmul.f32 %v56, %v59
    %v63 = vmul.f32 %v57, %v61
    %v64 = vsub.f32 1.0, %v47
    %v65 = vsub.f32 1.0, %v48
    %v66 = vsub.f32 0.0, %v53
    %v67 = vsub.f32 0.0, %v54
    %v68 = vadd.f32 %v66, 1.0
    %v69 = vlog2.pop %v68
    %v70 = vmul.f32 %v69, 0.6931472
    %v71 = vmul.f32 -0.5, %v66
    %v72 = vadd.f32 %v71, 1.0
    %v73 = vmul.f32 %v72, %v66
    %v74 = vand.u32 2147483647, %v66
    %vm75 = vcmp.lt.f32.partialorder %v74, 0.0004427343
    %v76 = vsel %vm75, %v73, %v70
    %v77 = vadd.f32 %v67, 1.0
    %v78 = vlog2.pop %v77
    %v79 = vmul.f32 %v78, 0.6931472
    %v80 = vmul.f32 -0.5, %v67
    %v81 = vadd.f32 %v80, 1.0
    %v82 = vmul.f32 %v81, %v67
    %v83 = vand.u32 2147483647, %v67
    %vm84 = vcmp.lt.f32.partialorder %v83, 0.0004427343
    %v85 = vsel %vm84, %v82, %v79
    %v86 = vmul.f32 %v64, %v76
    %v87 = vmul.f32 %v65, %v85
    %v88 = vadd.f32 %v62, %v86
    %v89 = vadd.f32 %v63, %v87
    %v90 = vsub.f32 0.0, %v88
    %v91 = vsub.f32 0.0, %v89
    %92 = vst [vmem:[#allocation9] sm:$0xff] %v90
    %93 = vst [vmem:[#allocation9 + $0x8] sm:$0xff] %v91
    // Predicated region
    $region18: #{tpu_custom_call.1} parent=1 // pred_check
      _
    $region19: #{tpu_custom_call.1} parent=1 // pred_check_branch
      %95 = sbr.rel (0) target = $region21
    $region20: #{tpu_custom_call.1} parent=1 // pred_region
      %97 = vsyncadd [#allocation6], 0
      %s98 = sshll.u32 [#allocation9], 4
      %s99 = int_to_ptr.vmem [resolvable:$true] %s98
      %s100 = sshll.u32 %s3, 4
      %s101 = int_to_ptr.hbm [resolvable:$true] %s100
      %106 = dma.vmem_to_hbm [thread:$0]  %s99, 256, %s101, [#allocation6], 128, 128, 8
    $region21: #{tpu_custom_call.1} parent=1 // pred_fallthru
      _
    // Predicated region
    $region22: #{tpu_custom_call.1} parent=1 // pred_check
      _
    $region23: #{tpu_custom_call.1} parent=1 // pred_check_branch
      %108 = sbr.rel (0) target = $region25
    $region24: #{tpu_custom_call.1} parent=1 // pred_region
      %110 = dma.done [#allocation6], 256
    $region25: #{tpu_custom_call.1} parent=1 // pred_fallthru
      _
    %111 = vsyncpa [#allocation5], 1
    %112 = vsyncpa [#allocation8], 1
    %113 = vsyncpa [#allocation6], 1

</llo_original>
